<compile_context>
chip_gen: v5e
topology: v5e:2x2
jax: 0.10.0
libtpu: 0.0.40
codegen_flags: <defaults>
</compile_context>

<pallas_src>
import math
from functools import partial

import jax
import jax.numpy as jnp
from jax.experimental import pallas as pl
from jax.experimental.pallas import tpu as pltpu

LN_EPS = 1e-5
MIB = 1024 * 1024


# --------------------------------------------------------------------------- #
# Helpers                                                                      #
# --------------------------------------------------------------------------- #
def _layernorm_f32(x_f32, gamma_ref, beta_ref):
    mu = jnp.mean(x_f32, axis=-1, keepdims=True)
    var = jnp.mean(jnp.square(x_f32 - mu), axis=-1, keepdims=True)
    ln = (x_f32 - mu) * jax.lax.rsqrt(var + LN_EPS)
    return ln * gamma_ref[...].astype(jnp.float32) + beta_ref[...].astype(jnp.float32)


def _pick_tile(n, candidates, align):
    """Largest candidate that divides n and is `align`-aligned; else full dim."""
    for c in candidates:
        if c <= n and n % c == 0 and c % align == 0:
            return c
    return n


def _vmem_capacity_bytes():
    try:
        return int(pltpu.get_tpu_info().vmem_capacity_bytes)
    except Exception:
        return 128 * MIB


def _vmem_budget_bytes():
    # Leave headroom for Mosaic internal scratch: ~100 MiB on v5e/v6e (128 MiB VMEM),
    # ~48 MiB on v7x (64 MiB VMEM).
    return min(_vmem_capacity_bytes() - 16 * MIB, 100 * MIB)


def _vmem_limit_bytes(est):
    return int(min(max(est * 5 // 4, 32 * MIB), _vmem_budget_bytes()))


# --------------------------------------------------------------------------- #
# Kernel 1: LN1(x) @ W_qkv  (no bias)                                          #
#   grid = (tokens // tm, 3C // tn): LN computed once per token tile into      #
#   scratch (weight dtype); W_qkv streamed in (C, tn) chunks.                  #
# --------------------------------------------------------------------------- #
def ln_matmul_kernel(x_ref, g_ref, b_ref, w_ref, o_ref, ln_sc):
    @pl.when(pl.program_id(1) == 0)
    def _init():
        ln_sc[...] = _layernorm_f32(
            x_ref[...].astype(jnp.float32), g_ref, b_ref).astype(ln_sc.dtype)

    o_ref[...] = jnp.dot(ln_sc[...], w_ref[...],
                         preferred_element_type=jnp.float32).astype(o_ref.dtype)


def ln_matmul_pallas(x2d, g, b, w):
    M, C = x2d.shape
    N = w.shape[1]
    tm = _pick_tile(M, (512, 256, 128, 64, 32, 16, 8), 8)
    tn = _pick_tile(N, (512, 256, 128), 128)
    xb = jnp.dtype(x2d.dtype).itemsize
    wb = jnp.dtype(w.dtype).itemsize

    vmem_est = (2 * tm * C * xb + 2 * C * tn * wb + 2 * tm * tn * xb
                + tm * C * wb + 4 * C * wb)
    cost = pl.CostEstimate(
        flops=2 * M * C * N,
        transcendentals=M,
        bytes_accessed=M * C * xb + C * N * wb + M * N * xb,
    )
    return pl.pallas_call(
        ln_matmul_kernel,
        out_shape=jax.ShapeDtypeStruct((M, N), x2d.dtype),
        grid_spec=pltpu.PrefetchScalarGridSpec(
            num_scalar_prefetch=0,
            grid=(M // tm, N // tn),
            in_specs=[
                pl.BlockSpec((tm, C), lambda i, j: (i, 0)),   # x token tile
                pl.BlockSpec((1, C), lambda i, j: (0, 0)),    # ln1 gamma
                pl.BlockSpec((1, C), lambda i, j: (0, 0)),    # ln1 beta
                pl.BlockSpec((C, tn), lambda i, j: (0, j)),   # W_qkv chunk (streamed)
            ],
            out_specs=pl.BlockSpec((tm, tn), lambda i, j: (i, j)),
            scratch_shapes=[pltpu.VMEM((tm, C), w.dtype)],    # LN1(x) in MXU dtype
        ),
        compiler_params=pltpu.CompilerParams(
            dimension_semantics=("parallel", "arbitrary"),
            vmem_limit_bytes=_vmem_limit_bytes(vmem_est)),
        cost_estimate=cost,
    )(x2d, g, b, w)


# --------------------------------------------------------------------------- #
# Kernel 2: flash-style attention over (B, nh, T, hs) q/k/v                    #
#   grid = (B, nh, T//tq, T//tkv); online softmax; bf16 MXU operands.          #
# --------------------------------------------------------------------------- #
def flash_attn_kernel(q_ref, k_ref, v_ref, o_ref, m_sc, l_sc, acc_sc, *, scale):
    kv = pl.program_id(3)

    @pl.when(kv == 0)
    def _init():
        m_sc[...] = jnp.full_like(m_sc, -jnp.inf)
        l_sc[...] = jnp.zeros_like(l_sc)
        acc_sc[...] = jnp.zeros_like(acc_sc)

    # bf16 MXU operands (fast path on v5e/v6e, only fast path on v7x); f32 accum.
    q = (q_ref[...].astype(jnp.float32) * scale).astype(jnp.bfloat16)
    k = k_ref[...].astype(jnp.bfloat16)
    s = jax.lax.dot_general(q, k, (((1,), (1,)), ((), ())),
                            preferred_element_type=jnp.float32)        # (tq, tkv)

    m_prev = m_sc[...]
    m_new = jnp.maximum(m_prev, jnp.max(s, axis=-1, keepdims=True))
    alpha = jnp.exp(m_prev - m_new)
    p = jnp.exp(s - m_new)
    l_sc[...] = alpha * l_sc[...] + jnp.sum(p, axis=-1, keepdims=True)
    acc_sc[...] = alpha * acc_sc[...] + jnp.dot(
        p.astype(jnp.bfloat16), v_ref[...].astype(jnp.bfloat16),
        preferred_element_type=jnp.float32)
    m_sc[...] = m_new

    @pl.when(kv == pl.num_programs(3) - 1)
    def _finalize():
        inv_l = pl.reciprocal(l_sc[...], approx=True)   # EUP slot, frees VALU
        o_ref[...] = (acc_sc[...] * inv_l).astype(o_ref.dtype)


def flash_attention_pallas(q, k, v):
    B, H, T, hs = q.shape
    scale = 1.0 / math.sqrt(hs)
    tq = _pick_tile(T, (256, 128, 64, 32, 16, 8), 8)
    tk = _pick_tile(T, (512, 256, 128, 64, 32, 16, 8), 8)
    nbytes = jnp.dtype(q.dtype).itemsize
    cost = pl.CostEstimate(
        flops=4 * B * H * T * T * hs,
        transcendentals=B * H * T * T,
        bytes_accessed=4 * B * H * T * hs * nbytes,
    )
    return pl.pallas_call(
        partial(flash_attn_kernel, scale=scale),
        out_shape=jax.ShapeDtypeStruct((B, H, T, hs), q.dtype),
        grid_spec=pltpu.PrefetchScalarGridSpec(
            num_scalar_prefetch=0,
            grid=(B, H, T // tq, T // tk),
            in_specs=[
                pl.BlockSpec((None, None, tq, hs), lambda b, h, qi, ki: (b, h, qi, 0)),
                pl.BlockSpec((None, None, tk, hs), lambda b, h, qi, ki: (b, h, ki, 0)),
                pl.BlockSpec((None, None, tk, hs), lambda b, h, qi, ki: (b, h, ki, 0)),
            ],
            out_specs=pl.BlockSpec((None, None, tq, hs),
                                   lambda b, h, qi, ki: (b, h, qi, 0)),
            scratch_shapes=[
                pltpu.VMEM((tq, 1), jnp.float32),    # running max
                pltpu.VMEM((tq, 1), jnp.float32),    # running denom
                pltpu.VMEM((tq, hs), jnp.float32),   # output accumulator
            ],
        ),
        compiler_params=pltpu.CompilerParams(
            dimension_semantics=("parallel", "parallel", "parallel", "arbitrary")),
        cost_estimate=cost,
    )(q, k, v)


# --------------------------------------------------------------------------- #
# Kernel 3: x + (y @ W_proj + b_proj)  -- single full-K projection, N-chunked  #
# --------------------------------------------------------------------------- #
def proj_residual_kernel(y_ref, x_ref, w_ref, b_ref, o_ref):
    y = y_ref[...].astype(w_ref.dtype)
    out = jnp.dot(y, w_ref[...], preferred_element_type=jnp.float32)
    out = out + b_ref[...].astype(jnp.float32) + x_ref[...].astype(jnp.float32)
    # resid_dropout: eval mode -> identity
    o_ref[...] = out.astype(o_ref.dtype)


def proj_residual_pallas(y2d, x2d, w, b):
    M, C = x2d.shape
    N = w.shape[1]
    tm = _pick_tile(M, (512, 256, 128, 64, 32, 16, 8), 8)
    tn = _pick_tile(N, (512, 256, 128), 128)
    xb = jnp.dtype(x2d.dtype).itemsize
    wb = jnp.dtype(w.dtype).itemsize

    vmem_est = (2 * tm * C * xb + 2 * tm * tn * xb + 2 * C * tn * wb
                + 2 * tm * tn * xb + 2 * tn * wb)
    cost = pl.CostEstimate(
        flops=2 * M * C * N,
        transcendentals=0,
        bytes_accessed=2 * M * C * xb + C * N * wb + M * N * xb,
    )
    return pl.pallas_call(
        proj_residual_kernel,
        out_shape=jax.ShapeDtypeStruct((M, N), x2d.dtype),
        grid_spec=pltpu.PrefetchScalarGridSpec(
            num_scalar_prefetch=0,
            grid=(M // tm, N // tn),
            in_specs=[
                pl.BlockSpec((tm, C), lambda i, j: (i, 0)),    # y (full K)
                pl.BlockSpec((tm, tn), lambda i, j: (i, j)),   # residual x tile
                pl.BlockSpec((C, tn), lambda i, j: (0, j)),    # W_proj chunk (streamed)
                pl.BlockSpec((1, tn), lambda i, j: (0, j)),    # b_proj chunk
            ],
            out_specs=pl.BlockSpec((tm, tn), lambda i, j: (i, j)),
        ),
        compiler_params=pltpu.CompilerParams(
            dimension_semantics=("parallel", "parallel"),
            vmem_limit_bytes=_vmem_limit_bytes(vmem_est)),
        cost_estimate=cost,
    )(y2d, x2d, w, b)


# --------------------------------------------------------------------------- #
# Kernel 4: x + MLP(LN2(x))                                                    #
#   grid = (tokens // tm, hidden // th): token axis "parallel" (megacore),     #
#   hidden axis "arbitrary" with a (tm, D) f32 accumulator; LN scratch kept    #
#   in the weight dtype; generation-aware tile / VMEM sizing.                  #
# --------------------------------------------------------------------------- #
def block_mlp_kernel(x_ref, g2_ref, beta2_ref, w1_ref, b1_ref, w2_ref, b2_ref,
                     o_ref, ln_sc, acc_sc):
    h_idx = pl.program_id(1)

    @pl.when(h_idx == 0)
    def _init():
        ln_sc[...] = _layernorm_f32(
            x_ref[...].astype(jnp.float32), g2_ref, beta2_ref).astype(ln_sc.dtype)
        acc_sc[...] = jnp.zeros_like(acc_sc)

    # c_fc slice: MXU operands in the parameter dtype; accumulation in f32.
    fc = jnp.dot(ln_sc[...], w1_ref[...], preferred_element_type=jnp.float32)
    fc = fc + b1_ref[...].astype(jnp.float32)

    # exact (erf) GELU -- matches torch.nn.GELU() default; runs on the EUP.
    g = 0.5 * fc * (1.0 + jax.lax.erf(fc * (1.0 / math.sqrt(2.0))))

    # c_proj partial product accumulated into the (tm, D) f32 accumulator.
    acc_sc[...] += jnp.dot(g.astype(w2_ref.dtype), w2_ref[...],
                           preferred_element_type=jnp.float32)

    @pl.when(h_idx == pl.num_programs(1) - 1)
    def _finalize():
        out = x_ref[...].astype(jnp.float32) + acc_sc[...] + b2_ref[...].astype(jnp.float32)
        # TODO(synk): training-mode dropout (pltpu.prng_seed + prng_random_bits mask)
        #             not implemented; eval mode -> identity.
        o_ref[...] = out.astype(o_ref.dtype)


def mlp_block_pallas(x2d, g2, beta2, w1, b1, w2, b2):
    """x2d: (M, D). Returns x2d + MLP(LN2(x2d)), shape (M, D)."""
    M, D = x2d.shape
    H = w1.shape[1]  # 4 * D
    xb = jnp.dtype(x2d.dtype).itemsize
    wb = jnp.dtype(w1.dtype).itemsize

    budget = _vmem_budget_bytes()
    th = _pick_tile(H, (512, 256, 128), 128)

    def est_bytes(tm):
        return (4 * tm * D * xb                        # double-buffered x/out tiles
                + 2 * (D * th + th * D + th + D) * wb  # double-buffered weight/bias chunks
                + tm * D * wb                          # LN2 scratch (weight dtype)
                + tm * D * 4)                          # f32 accumulator

    # v5e/v6e (128 MiB VMEM): large token tile to clear the HBM roofline on the
    # re-streamed weights; v7x (64 MiB VMEM): smaller tile, HBM is fast enough.
    if _vmem_capacity_bytes() > 96 * MIB:
        tm_candidates = (1024, 512, 256, 128, 64, 32, 16, 8)
    else:
        tm_candidates = (256, 128, 64, 32, 16, 8)
    tm = None
    for c in tm_candidates:
        if c <= M and M % c == 0 and est_bytes(c) <= budget:
            tm = c
            break
    if tm is None:
        tm = _pick_tile(M, tm_candidates, 8)
    grid = (M // tm, H // th)

    cost = pl.CostEstimate(
        flops=4 * M * D * H,
        transcendentals=M * H,
        bytes_accessed=2 * M * D * xb + (2 * D * H + H + D) * wb,
    )
    return pl.pallas_call(
        block_mlp_kernel,
        out_shape=jax.ShapeDtypeStruct((M, D), x2d.dtype),
        grid_spec=pltpu.PrefetchScalarGridSpec(
            num_scalar_prefetch=0,
            grid=grid,
            in_specs=[
                pl.BlockSpec((tm, D), lambda i, h: (i, 0)),   # x tile (LN input + residual)
                pl.BlockSpec((1, D), lambda i, h: (0, 0)),    # ln2 gamma
                pl.BlockSpec((1, D), lambda i, h: (0, 0)),    # ln2 beta
                pl.BlockSpec((D, th), lambda i, h: (0, h)),   # W1 hidden-chunk
                pl.BlockSpec((1, th), lambda i, h: (0, h)),   # b1 hidden-chunk
                pl.BlockSpec((th, D), lambda i, h: (h, 0)),   # W2 hidden-chunk
                pl.BlockSpec((1, D), lambda i, h: (0, 0)),    # b2
            ],
            out_specs=pl.BlockSpec((tm, D), lambda i, h: (i, 0)),
            scratch_shapes=[
                pltpu.VMEM((tm, D), w1.dtype),      # LN2(x) tile in MXU dtype
                pltpu.VMEM((tm, D), jnp.float32),   # output accumulator
            ],
        ),
        compiler_params=pltpu.CompilerParams(
            dimension_semantics=("parallel", "arbitrary"),
            vmem_limit_bytes=_vmem_limit_bytes(est_bytes(tm))),
        cost_estimate=cost,
    )(x2d, g2, beta2, w1, b1, w2, b2)


# --------------------------------------------------------------------------- #
# Full Block forward                                                           #
# --------------------------------------------------------------------------- #
def block_forward(x, params, *, n_head):
    B, T, C = x.shape
    hs = C // n_head
    M = B * T
    x2d = x.reshape(M, C)

    # ---- x = x + attn(ln1(x)) ----
    qkv = ln_matmul_pallas(x2d, params["g1"], params["beta1"], params["wqkv"])  # (M, 3C)
    qkv = qkv.reshape(B, T, 3, n_head, hs).transpose(2, 0, 3, 1, 4)             # (3,B,nh,T,hs)
    y = flash_attention_pallas(qkv[0], qkv[1], qkv[2])                          # (B,nh,T,hs)
    y2d = y.transpose(0, 2, 1, 3).reshape(M, C)                                 # (M, C)
    x2d = proj_residual_pallas(y2d, x2d, params["wproj"], params["bproj"])      # (M, C)

    # ---- x = x + mlp(ln2(x)) ----
    out2d = mlp_block_pallas(x2d, params["g2"], params["beta2"],
                             params["w1"], params["b1"], params["w2"], params["b2"])
    return out2d.reshape(B, T, C)


# --------------------------------------------------------------------------- #
# Pure-JAX reference                                                           #
# --------------------------------------------------------------------------- #
def _ln_ref(x, g, b):
    mu = jnp.mean(x, axis=-1, keepdims=True)
    var = jnp.mean(jnp.square(x - mu), axis=-1, keepdims=True)
    return (x - mu) / jnp.sqrt(var + LN_EPS) * g + b


def block_reference(x, p, *, n_head):
    B, T, C = x.shape
    hs = C // n_head
    h = _ln_ref(x, p["g1"], p["beta1"])
    qkv = h @ p["wqkv"]
    q, k, v = jnp.split(qkv, 3, axis=-1)
    to_heads = lambda t: t.reshape(B, T, n_head, hs).transpose(0, 2, 1, 3)
    q, k, v = map(to_heads, (q, k, v))
    s = jnp.einsum("bhqd,bhkd->bhqk", q, k) / math.sqrt(hs)
    a = jax.nn.softmax(s, axis=-1)
    y = jnp.einsum("bhqk,bhkd->bhqd", a, v)
    y = y.transpose(0, 2, 1, 3).reshape(B, T, C)
    x = x + (y @ p["wproj"] + p["bproj"])
    h2 = _ln_ref(x, p["g2"], p["beta2"])
    m = h2 @ p["w1"] + p["b1"]
    m = 0.5 * m * (1.0 + jax.lax.erf(m / math.sqrt(2.0)))
    m = m @ p["w2"] + p["b2"]
    return x + m


if __name__ == "__main__":
    batch, seq, n_embd, n_head = 2, 8, 32, 4
    hidden = 4 * n_embd
    dropout_p = 0.1   # eval mode -> dropout layers are identity

    key = jax.random.PRNGKey(0)
    ks = jax.random.split(key, 13)
    u = lambda k, shape, bound: jax.random.uniform(k, shape, jnp.float32, -bound, bound)

    ba = 1.0 / math.sqrt(n_embd)
    bm = 1.0 / math.sqrt(hidden)
    params = dict(
        g1=1.0 + 0.1 * jax.random.normal(ks[1], (1, n_embd), jnp.float32),
        beta1=0.1 * jax.random.normal(ks[2], (1, n_embd), jnp.float32),
        wqkv=u(ks[3], (n_embd, 3 * n_embd), ba),          # c_attn (bias=False)
        wproj=u(ks[4], (n_embd, n_embd), ba),
        bproj=u(ks[5], (1, n_embd), ba),
        g2=1.0 + 0.1 * jax.random.normal(ks[6], (1, n_embd), jnp.float32),
        beta2=0.1 * jax.random.normal(ks[7], (1, n_embd), jnp.float32),
        w1=u(ks[8], (n_embd, hidden), ba),
        b1=u(ks[9], (1, hidden), ba),
        w2=u(ks[10], (hidden, n_embd), bm),
        b2=u(ks[11], (1, n_embd), bm),
    )
    x = jax.random.normal(ks[0], (batch, seq, n_embd), jnp.float32)

    out = block_forward(x, params, n_head=n_head)
    jax.block_until_ready(out)

    with jax.default_matmul_precision("highest"):
        ref = block_reference(x, params, n_head=n_head)
    ref = jax.block_until_ready(ref)

    err = float(jnp.max(jnp.abs(out - ref)))
    assert out.shape == ref.shape
    # bf16 MXU operands in the attention score/PV matmuls + approx reciprocal loosen
    # agreement vs the f32 "highest"-precision reference -> 2e-2 tolerance.
    assert jnp.allclose(out, ref, atol=2e-2, rtol=2e-2), f"mismatch vs reference, max|diff|={err}"

    print("KERNEL_OK")
</pallas_src>

<mosaic_0001>
module attributes {stable_mosaic.version = 11 : i64} {
  func.func @ln_matmul_kernel(%arg0: i32, %arg1: i32, %arg2: memref<16x32xf32, #tpu.memory_space<vmem>>, %arg3: memref<1x32xf32, #tpu.memory_space<vmem>>, %arg4: memref<1x32xf32, #tpu.memory_space<vmem>>, %arg5: memref<32x96xf32, #tpu.memory_space<vmem>>, %arg6: memref<16x96xf32, #tpu.memory_space<vmem>>, %arg7: memref<16x32xf32, #tpu.memory_space<vmem>>) attributes {dimension_semantics = [#tpu.dimension_semantics<parallel>, #tpu.dimension_semantics<arbitrary>], iteration_bounds = array<i64: 1, 1>, scalar_prefetch = 0 : i64, scratch_operands = 1 : i64, tpu.core_type = #tpu.core_type<tc>, window_params = [{transform_indices = @transform_0, window_bounds = array<i64: 16, 32>}, {pipeline_mode = #tpu.pipeline_mode<synchronous>, transform_indices = @transform_1, window_bounds = array<i64: 1, 32>}, {pipeline_mode = #tpu.pipeline_mode<synchronous>, transform_indices = @transform_2, window_bounds = array<i64: 1, 32>}, {transform_indices = @transform_3, window_bounds = array<i64: 32, 96>}, {transform_indices = @transform_4, window_bounds = array<i64: 16, 96>}]} {
    %c0_i32 = arith.constant 0 : i32
    %0 = arith.cmpi eq, %arg1, %c0_i32 : i32
    %1 = arith.extui %0 : i1 to i32
    %c0_i32_0 = arith.constant 0 : i32
    %2 = arith.cmpi ne, %1, %c0_i32_0 : i32
    scf.if %2 {
      %c0_6 = arith.constant 0 : index
      %c0_7 = arith.constant 0 : index
      %7 = vector.load %arg2[%c0_6, %c0_7] : memref<16x32xf32, #tpu.memory_space<vmem>>, vector<16x32xf32>
      %cst_8 = arith.constant dense<0.000000e+00> : vector<16xf32>
      %8 = vector.multi_reduction <add>, %7, %cst_8 [1] : vector<16x32xf32> to vector<16xf32>
      %9 = vector.shape_cast %8 : vector<16xf32> to vector<16x1xf32>
      %cst_9 = arith.constant 3.200000e+01 : f32
      %10 = vector.broadcast %cst_9 : f32 to vector<16x1xf32>
      %11 = arith.divf %9, %10 : vector<16x1xf32>
      %12 = vector.broadcast %11 : vector<16x1xf32> to vector<16x32xf32>
      %13 = arith.subf %7, %12 : vector<16x32xf32>
      %14 = arith.mulf %13, %13 : vector<16x32xf32>
      %cst_10 = arith.constant dense<0.000000e+00> : vector<16xf32>
      %15 = vector.multi_reduction <add>, %14, %cst_10 [1] : vector<16x32xf32> to vector<16xf32>
      %16 = vector.shape_cast %15 : vector<16xf32> to vector<16x1xf32>
      %cst_11 = arith.constant 3.200000e+01 : f32
      %17 = vector.broadcast %cst_11 : f32 to vector<16x1xf32>
      %18 = arith.divf %16, %17 : vector<16x1xf32>
      %19 = vector.broadcast %11 : vector<16x1xf32> to vector<16x32xf32>
      %20 = arith.subf %7, %19 : vector<16x32xf32>
      %cst_12 = arith.constant 9.99999974E-6 : f32
      %21 = vector.broadcast %cst_12 : f32 to vector<16x1xf32>
      %22 = arith.addf %18, %21 : vector<16x1xf32>
      %23 = math.rsqrt %22 : vector<16x1xf32>
      %24 = vector.broadcast %23 : vector<16x1xf32> to vector<16x32xf32>
      %25 = arith.mulf %20, %24 : vector<16x32xf32>
      %c0_13 = arith.constant 0 : index
      %c0_14 = arith.constant 0 : index
      %26 = vector.load %arg3[%c0_13, %c0_14] : memref<1x32xf32, #tpu.memory_space<vmem>>, vector<1x32xf32>
      %27 = vector.broadcast %26 : vector<1x32xf32> to vector<16x32xf32>
      %28 = arith.mulf %25, %27 : vector<16x32xf32>
      %c0_15 = arith.constant 0 : index
      %c0_16 = arith.constant 0 : index
      %29 = vector.load %arg4[%c0_15, %c0_16] : memref<1x32xf32, #tpu.memory_space<vmem>>, vector<1x32xf32>
      %30 = vector.broadcast %29 : vector<1x32xf32> to vector<16x32xf32>
      %31 = arith.addf %28, %30 : vector<16x32xf32>
      %c0_17 = arith.constant 0 : index
      %c0_18 = arith.constant 0 : index
      %32 = vector.load %arg7[%c0_17, %c0_18] : memref<16x32xf32, #tpu.memory_space<vmem>>, vector<16x32xf32>
      tpu.vector_store %arg7[%c0_17, %c0_18], %31 {strides = array<i32>} : memref<16x32xf32, #tpu.memory_space<vmem>>, vector<16x32xf32>,
    } else {
    }
    %c0 = arith.constant 0 : index
    %c0_1 = arith.constant 0 : index
    %3 = vector.load %arg7[%c0, %c0_1] : memref<16x32xf32, #tpu.memory_space<vmem>>, vector<16x32xf32>
    %c0_2 = arith.constant 0 : index
    %c0_3 = arith.constant 0 : index
    %4 = vector.load %arg5[%c0_2, %c0_3] : memref<32x96xf32, #tpu.memory_space<vmem>>, vector<32x96xf32>
    %cst = arith.constant dense<0.000000e+00> : vector<16x96xf32>
    %5 = tpu.matmul %3, %4, %cst {dimension_numbers = #tpu.dot_dimension_numbers<[1], [0], [0], [1], [0, 0, 1, 1], [], []>} : vector<16x32xf32>, vector<32x96xf32>, vector<16x96xf32> -> vector<16x96xf32>
    %c0_4 = arith.constant 0 : index
    %c0_5 = arith.constant 0 : index
    %6 = vector.load %arg6[%c0_4, %c0_5] : memref<16x96xf32, #tpu.memory_space<vmem>>, vector<16x96xf32>
    tpu.vector_store %arg6[%c0_4, %c0_5], %5 {strides = array<i32>} : memref<16x96xf32, #tpu.memory_space<vmem>>, vector<16x96xf32>,
    return
  }
  func.func @transform_0(%arg0: i32, %arg1: i32) -> (i32, i32) {
    %c0_i32 = arith.constant 0 : i32
    %c0_i32_0 = arith.constant 0 : i32
    return %arg0, %c0_i32 : i32, i32
  }
  func.func @transform_1(%arg0: i32, %arg1: i32) -> (i32, i32) {
    %c0_i32 = arith.constant 0 : i32
    %c0_i32_0 = arith.constant 0 : i32
    %c0_i32_1 = arith.constant 0 : i32
    return %c0_i32, %c0_i32_0 : i32, i32
  }
  func.func @transform_2(%arg0: i32, %arg1: i32) -> (i32, i32) {
    %c0_i32 = arith.constant 0 : i32
    %c0_i32_0 = arith.constant 0 : i32
    %c0_i32_1 = arith.constant 0 : i32
    return %c0_i32, %c0_i32_0 : i32, i32
  }
  func.func @transform_3(%arg0: i32, %arg1: i32) -> (i32, i32) {
    %c0_i32 = arith.constant 0 : i32
    %c0_i32_0 = arith.constant 0 : i32
    return %c0_i32, %arg1 : i32, i32
  }
  func.func @transform_4(%arg0: i32, %arg1: i32) -> (i32, i32) {
    %c0_i32 = arith.constant 0 : i32
    return %arg0, %arg1 : i32, i32
  }
}

</mosaic_0001>

<llo_original>
// kernel: tpu_custom_call.1
$region0: #{tpu_custom_call.1}
  #allocation0 [shape = 'u32[]', space=smem, size = 0x4, offset = 0x4, fixed_abs, tag = 'smem constant byte address 0x4 - core index']
  #allocation1 [shape = 'u32[72,128]{1,0:T(1,128)}', space=vmem, size = 0x9000, scoped, tag = 'internal scratch']
  #allocation2 [shape = 'f32[16,32]{1,0:T(8,128)}', space=vmem, size = 0x2000, scoped, tag = 'scratch operand']
  %s0 = inlined_call_operand.hbm [shape: f32[16,32], index: 0, kind: input, shape index: {}]
  %s1 = inlined_call_operand.hbm [shape: f32[1,32], index: 1, kind: input, shape index: {}]
  %s2 = inlined_call_operand.vmem [shape: f32[1,32], index: 2, kind: input, shape index: {}]
  %s3 = inlined_call_operand.hbm [shape: f32[32,96], index: 3, kind: input, shape index: {}]
  %s4 = inlined_call_operand.hbm [shape: f32[16,96], index: 4, kind: output, shape index: {}]
  %s5 = sld [smem:[#allocation0]]
  $region42: #{tpu_custom_call.1} parent=0
    _
  %s7 = ssub.s32 1, %s5
  %s8 = scalar_select 0, %s7, %s5
  $region1: #{tpu_custom_call.1} parent=0
    #allocation3 [shape = 'u8[8192]{0}', space=vmem, size = 0x2000, scoped, tag = 'input window, operand 0, single buffered']
    #allocation4 [shape = 's32[1]{0}', space=sflag, size = 0x4, scoped, tag = 'scoped memory for tpu_custom_call.1']
    #allocation5 [shape = 's32[1]{0}', space=sflag, size = 0x4, scoped, tag = 'scoped memory for tpu_custom_call.1']
    #allocation6 [shape = 'u8[512]{0}', space=vmem, size = 0x400, scoped, tag = 'input window, operand 1, single buffered']
    #allocation7 [shape = 's32[1]{0}', space=sflag, size = 0x4, scoped, tag = 'scoped memory for tpu_custom_call.1']
    #allocation8 [shape = 'u8[16384]{0}', space=vmem, size = 0x4000, scoped, tag = 'input window, operand 3, single buffered']
    #allocation9 [shape = 'u8[8192]{0}', space=vmem, size = 0x2000, scoped, tag = 'output window, operand 0, single buffered']
    %9 = vsyncpa [#allocation4], 0
    %10 = vsyncpa [#allocation7], 0
    %11 = vsyncpa [#allocation5], 0
    // Predicated region
    $region2: #{tpu_custom_call.1} parent=1 // pred_check
      _
    $region3: #{tpu_custom_call.1} parent=1 // pred_check_branch
      %13 = sbr.rel (0) target = $region5
    $region4: #{tpu_custom_call.1} parent=1 // pred_region
      %15 = vsyncadd [#allocation4], 0
      %s16 = sshll.u32 %s0, 4
      %s17 = int_to_ptr.hbm [resolvable:$true] %s16
      %s18 = sshll.u32 [#allocation3], 4
      %s19 = int_to_ptr.vmem [resolvable:$true] %s18
      %24 = dma.hbm_to_vmem [thread:$0]  %s17, 256, %s19, [#allocation4], 128, 128, 8
    $region5: #{tpu_custom_call.1} parent=1 // pred_fallthru
      _
    // Predicated region
    $region6: #{tpu_custom_call.1} parent=1 // pred_check
      _
    $region7: #{tpu_custom_call.1} parent=1 // pred_check_branch
      %26 = sbr.rel (0) target = $region9
    $region8: #{tpu_custom_call.1} parent=1 // pred_region
      %28 = vsyncadd [#allocation7], 0
      %s30 = sshll.u32 %s1, 4
      %s31 = int_to_ptr.hbm [resolvable:$true] %s30
      %s32 = sshll.u32 [#allocation6], 4
      %s33 = int_to_ptr.vmem [resolvable:$true] %s32
      %35 = dma.hbm_to_vmem [thread:$0]  %s31, 16, %s33, [#allocation7]
    $region9: #{tpu_custom_call.1} parent=1 // pred_fallthru
      _
    // Predicated region
    $region10: #{tpu_custom_call.1} parent=1 // pred_check
      _
    $region11: #{tpu_custom_call.1} parent=1 // pred_check_branch
      %37 = sbr.rel (0) target = $region13
    $region12: #{tpu_custom_call.1} parent=1 // pred_region
      _
    $region13: #{tpu_custom_call.1} parent=1 // pred_fallthru
      _
    // Predicated region
    $region14: #{tpu_custom_call.1} parent=1 // pred_check
      _
    $region15: #{tpu_custom_call.1} parent=1 // pred_check_branch
      %39 = sbr.rel (0) target = $region17
    $region16: #{tpu_custom_call.1} parent=1 // pred_region
      %41 = vsyncadd [#allocation7], 0
      %s42 = sshll.u32 %s3, 4
      %s43 = int_to_ptr.hbm [resolvable:$true] %s42
      %s44 = sshll.u32 [#allocation8], 4
      %s45 = int_to_ptr.vmem [resolvable:$true] %s44
      %50 = dma.hbm_to_vmem [thread:$0]  %s43, 512, %s45, [#allocation7], 128, 128, 8
    $region17: #{tpu_custom_call.1} parent=1 // pred_fallthru
      _
    // Predicated region
    $region18: #{tpu_custom_call.1} parent=1 // pred_check
      _
    $region19: #{tpu_custom_call.1} parent=1 // pred_check_branch
      %52 = sbr.rel (0) target = $region21
    $region20: #{tpu_custom_call.1} parent=1 // pred_region
      %54 = dma.done [#allocation4], 256
    $region21: #{tpu_custom_call.1} parent=1 // pred_fallthru
      _
    // Predicated region
    $region22: #{tpu_custom_call.1} parent=1 // pred_check
      _
    $region23: #{tpu_custom_call.1} parent=1 // pred_check_branch
      %56 = sbr.rel (0) target = $region25
    $region24: #{tpu_custom_call.1} parent=1 // pred_region
      %58 = dma.done [#allocation7], 16
    $region25: #{tpu_custom_call.1} parent=1 // pred_fallthru
      _
    // Predicated region
    $region26: #{tpu_custom_call.1} parent=1 // pred_check
      _
    $region27: #{tpu_custom_call.1} parent=1 // pred_check_branch
      %60 = sbr.rel (0) target = $region29
    $region28: #{tpu_custom_call.1} parent=1 // pred_region
      %62 = dma.done [#allocation7], 512
    $region29: #{tpu_custom_call.1} parent=1 // pred_fallthru
      _
    %p63 = scmp.eq.s32.totalorder 0, 0
    // Predicated region
    $region30: #{tpu_custom_call.1} parent=1 // pred_check
      %p64 = pneg %p63
    $region31: #{tpu_custom_call.1} parent=1 // pred_check_branch
      %66 = sbr.rel (%p64) target = $region33
    $region32: #{tpu_custom_call.1} parent=1 // pred_region
      %v67 = vld [vmem:[#allocation3] sm:$0xff]
      %v68 = vld [vmem:[#allocation3 + $0x8] sm:$0xff]
      %vm69 = vcmask 261120
      %v70 = vsel %vm69, %v67, 0.0
      %71 = vadd.xlane.f32.xlu0 %v70
      %v72 = vpop.xlane.xlu0 %71
      %v73 = vsel %vm69, %v68, 0.0
      %74 = vadd.xlane.f32.xlu0 %v73
      %v75 = vpop.xlane.xlu0 %74
      %v76 = vrcp.pop 32.0
      %v77 = vmul.f32 32.0, %v76
      %v78 = vsub.f32 1.0, %v77
      %v79 = vmul.f32 %v76, %v78
      %v80 = vadd.f32 %v76, %v79
      %vm81 = vweird.f32 %v76
      %v82 = vsel %vm81, %v76, %v80
      %v83 = vmul.f32 %v72, %v82
      %v84 = vmul.f32 %v75, %v82
      %v85 = vsub.f32 %v67, %v83
      %v86 = vsub.f32 %v68, %v84
      %v87 = vmul.f32 %v85, %v85
      %v88 = vmul.f32 %v86, %v86
      %v89 = vsel %vm69, %v87, 0.0
      %90 = vadd.xlane.f32.xlu0 %v89
      %v91 = vpop.xlane.xlu0 %90
      %v92 = vsel %vm69, %v88, 0.0
      %93 = vadd.xlane.f32.xlu0 %v92
      %v94 = vpop.xlane.xlu0 %93
      %v95 = vmul.f32 %v91, %v82
      %v96 = vmul.f32 %v94, %v82
      %v97 = vadd.f32 %v95, 1e-05
      %v98 = vadd.f32 %v96, 1e-05
      %v99 = vrsqrt.pop %v97
      %v100 = vmul.f32 %v99, %v97
      %v101 = vmul.f32 %v100, %v99
      %v102 = vmul.f32 0.5, %v101
      %v103 = vsub.f32 1.5, %v102
      %v104 = vmul.f32 %v99, %v103
      %vm105 = vweird.f32 %v97
      %vm106 = vweird.f32 %v99
      %vm107 = vmor %vm105, %vm106
      %v108 = vsel %vm107, %v99, %v104
      %v109 = vrsqrt.pop %v98
      %v110 = vmul.f32 %v109, %v98
      %v111 = vmul.f32 %v110, %v109
      %v112 = vmul.f32 0.5, %v111
      %v113 = vsub.f32 1.5, %v112
      %v114 = vmul.f32 %v109, %v113
      %vm115 = vweird.f32 %v98
      %vm116 = vweird.f32 %v109
      %vm117 = vmor %vm115, %vm116
      %v118 = vsel %vm117, %v109, %v114
      %v119 = vmul.f32 %v85, %v108
      %v120 = vmul.f32 %v86, %v118
      %v121 = vld [vmem:[#allocation6] sm:$0x1]
      %v123 = vperm.slane %v121, 0
      %v125 = vmul.f32 %v119, %v123
      %v126 = vmul.f32 %v120, %v123
      %v127 = vld [vmem:[%s2] sm:$0x1]
      %v129 = vperm.slane %v127, 0
      %v131 = vadd.f32 %v125, %v129
      %v132 = vadd.f32 %v126, %v129
      %133 = vst.msk [vmem:[#allocation2] sm:$0xff] %vm69, %v131
      %134 = vst.msk [vmem:[#allocation2 + $0x8] sm:$0xff] %vm69, %v132
    $region33: #{tpu_custom_call.1} parent=1 // pred_fallthru
      _
    %v135 = vld [vmem:[#allocation2] sm:$0xff]
    %v136 = vld [vmem:[#allocation2 + $0x8] sm:$0xff]
    %v137 = vld [vmem:[#allocation8] sm:$0xff]
    %v138 = vld [vmem:[#allocation8 + $0x8] sm:$0xff]
    %v139 = vld [vmem:[#allocation8 + $0x10] sm:$0xff]
    %v140 = vld [vmem:[#allocation8 + $0x18] sm:$0xff]
    %vm141 = vcmask 261120
    %v143 = vsel %vm141, %v135, 0
    %v146 = vsel %vm141, %v136, 0
    %148 = vmatpush.msra.mxu0 0.0
    %149 = vmatpush.msra.mxu0 0.0
    %150 = vmatpush.msra.mxu0 0.0
    %151 = vmatpush.msra.mxu0 0.0
    %152 = vmatpush.msra.mxu0 0.0
    %153 = vmatpush.msra.mxu0 0.0
    %154 = vmatpush.msra.mxu0 0.0
    %155 = vmatpush.msra.mxu0 0.0
    %156 = vmatpush.msra.mxu0 0.0
    %157 = vmatpush.msra.mxu0 0.0
    %158 = vmatpush.msra.mxu0 0.0
    %159 = vmatpush.msra.mxu0 0.0
    %160 = vmatpush.msra.mxu0 %v140
    %161 = vmatpush.msra.mxu0 %v139
    %162 = vmatpush.msra.mxu0 %v138
    %163 = vmatpush.msra.mxu0 %v137
    %164 = vmatmul.f32.gmra.mxu0 %v143
    %v165 = vpop.f32.mrf.mxu0
    %v166 = vadd.f32 0.0, %v165
    %167 = vmatmul.f32.gmra.mxu0 %v146
    %v168 = vpop.f32.mrf.mxu0
    %v169 = vadd.f32 0.0, %v168
    %170 = vdwg.mxu0
    %vm171 = vcmask 785408
    %172 = vst.msk [vmem:[#allocation9] sm:$0xff] %vm171, %v166
    %173 = vst.msk [vmem:[#allocation9 + $0x8] sm:$0xff] %vm171, %v169
    // Predicated region
    $region34: #{tpu_custom_call.1} parent=1 // pred_check
      _
    $region35: #{tpu_custom_call.1} parent=1 // pred_check_branch
      %175 = sbr.rel (0) target = $region37
    $region36: #{tpu_custom_call.1} parent=1 // pred_region
      %177 = vsyncadd [#allocation5], 0
      %s178 = sshll.u32 [#allocation9], 4
      %s179 = int_to_ptr.vmem [resolvable:$true] %s178
      %s180 = sshll.u32 %s4, 4
      %s181 = int_to_ptr.hbm [resolvable:$true] %s180
      %186 = dma.vmem_to_hbm [thread:$0]  %s179, 256, %s181, [#allocation5], 128, 128, 8
    $region37: #{tpu_custom_call.1} parent=1 // pred_fallthru
      _
    // Predicated region
    $region38: #{tpu_custom_call.1} parent=1 // pred_check
      _
    $region39: #{tpu_custom_call.1} parent=1 // pred_check_branch
      %188 = sbr.rel (0) target = $region41
    $region40: #{tpu_custom_call.1} parent=1 // pred_region
      %190 = dma.done [#allocation5], 256
    $region41: #{tpu_custom_call.1} parent=1 // pred_fallthru
      _
    %191 = vsyncpa [#allocation4], 1
    %192 = vsyncpa [#allocation7], 1
    %193 = vsyncpa [#allocation5], 1

</llo_original>
